<compile_context>
chip_gen: v7x
topology: tpu7x:2x2x1
jax: 0.10.0
libtpu: 0.0.40
codegen_flags: <defaults>
</compile_context>

<pallas_src>
import functools
import math

import jax
import jax.numpy as jnp
import numpy as np
from jax.experimental import pallas as pl
from jax.experimental.pallas import tpu as pltpu


# ----------------------------- helpers -----------------------------

def _pick_row_tile(rows, max_tile=256):
    """Largest multiple-of-8 row tile that divides `rows` (<= max_tile);
    prefer >=2 grid steps so the v7x megacore has something to shard."""
    if rows % 8 != 0:
        return rows                       # full block (== array dim is legal)
    t = min(max_tile, rows)
    while rows % t:
        t -= 8
    if t == rows and rows >= 16 and (rows // 2) % 8 == 0:
        t = rows // 2
    return t


def _row_spec(tr, d):
    return pl.BlockSpec((tr, d), lambda i: (i, 0))


def _const_spec(shape):
    return pl.BlockSpec(shape, lambda i: (0, 0))


def _layer_norm_f32(x, a, b, eps):
    """torch-style LN: unbiased std (D-1), eps added to std, all f32."""
    d = x.shape[-1]
    mean = jnp.mean(x, axis=-1, keepdims=True)
    diff = x - mean
    var = jnp.sum(diff * diff, axis=-1, keepdims=True) * (1.0 / (d - 1))
    inv_std = pl.reciprocal(jnp.sqrt(var) + eps, approx=True)   # EUP, not VALU
    return a * diff * inv_std + b


# ----------------------------- Pallas kernels -----------------------------

def _ln_linear_kernel(x_ref, a_ref, b_ref, w_ref, bias_ref, *o_refs, eps):
    """out = LayerNorm(x) @ W + bias, split column-wise across o_refs."""
    x = x_ref[...].astype(jnp.float32)
    y = _layer_norm_f32(x, a_ref[...], b_ref[...], eps)
    acc = jnp.dot(y.astype(w_ref.dtype), w_ref[...],
                  preferred_element_type=jnp.float32) + bias_ref[...]
    n = len(o_refs)
    dout = acc.shape[-1] // n
    for i, o_ref in enumerate(o_refs):
        o_ref[...] = acc[:, i * dout:(i + 1) * dout].astype(o_ref.dtype)


def _linear_kernel(x_ref, w_ref, bias_ref, *o_refs):
    """out = x @ W + bias, split column-wise across o_refs."""
    acc = jnp.dot(x_ref[...].astype(w_ref.dtype), w_ref[...],
                  preferred_element_type=jnp.float32) + bias_ref[...]
    n = len(o_refs)
    dout = acc.shape[-1] // n
    for i, o_ref in enumerate(o_refs):
        o_ref[...] = acc[:, i * dout:(i + 1) * dout].astype(o_ref.dtype)


def _ln_ffn_kernel(x_ref, a_ref, b_ref, w1_ref, b1_ref, w2_ref, b2_ref, o_ref,
                   *, eps):
    """out = x + relu(LayerNorm(x) @ W1 + b1) @ W2 + b2 (fused sublayer 2)."""
    x = x_ref[...].astype(jnp.float32)
    y = _layer_norm_f32(x, a_ref[...], b_ref[...], eps)
    h = jnp.dot(y.astype(w1_ref.dtype), w1_ref[...],
                preferred_element_type=jnp.float32) + b1_ref[...]
    h = jnp.maximum(h, 0.0)
    out = jnp.dot(h.astype(w2_ref.dtype), w2_ref[...],
                  preferred_element_type=jnp.float32) + b2_ref[...]
    o_ref[...] = (x + out).astype(o_ref.dtype)


def _attn_kernel(q_ref, k_ref, v_ref, m_ref, x_ref, wo_ref, bo_ref, o_ref,
                 *, num_heads):
    """Per-batch MHA + output projection + residual add.

    Blocks: q [1,T,D], k/v [1,Tk,D], mask [1,T,Tk] (one DMA per batch),
    x [1,T,D] residual, wo [D,D], bo [1,D]  ->  out [1,T,D] (lane-dense)."""
    D = q_ref.shape[2]
    dk = D // num_heads
    scale = 1.0 / math.sqrt(dk)
    q = q_ref[0]                       # [T, D]   bf16
    k = k_ref[0]                       # [Tk, D]
    v = v_ref[0]                       # [Tk, D]
    mask = m_ref[0]                    # [T, Tk]  f32

    ctx_heads = []
    for h in range(num_heads):         # static unroll over heads
        lo = h * dk
        qh = q[:, lo:lo + dk]
        kh = k[:, lo:lo + dk]
        vh = v[:, lo:lo + dk]
        # contract last dims directly (no explicit transpose of k)
        s = jax.lax.dot_general(qh, kh, (((1,), (1,)), ((), ())),
                                preferred_element_type=jnp.float32) * scale
        s = jnp.where(mask == 0.0, jnp.float32(-1e9), s)
        s_max = jnp.max(s, axis=-1, keepdims=True)
        p = jnp.exp(s - s_max)
        p = p * pl.reciprocal(jnp.sum(p, axis=-1, keepdims=True), approx=True)
        ctx_heads.append(jnp.dot(p.astype(vh.dtype), vh,
                                 preferred_element_type=jnp.float32))
    ctx = jnp.concatenate(ctx_heads, axis=-1)                  # [T, D] f32
    out = jnp.dot(ctx.astype(wo_ref.dtype), wo_ref[...],
                  preferred_element_type=jnp.float32) + bo_ref[...]
    o_ref[0] = (x_ref[0] + out).astype(o_ref.dtype)


# ----------------------------- wrappers -----------------------------

def ln_linear(x2d, a, b, w, bias, *, n_out=1, out_dtype=jnp.bfloat16, eps=1e-6):
    rows, d = x2d.shape
    dout_total = w.shape[1]
    dsplit = dout_total // n_out
    tr = _pick_row_tile(rows)
    out_shape = tuple(jax.ShapeDtypeStruct((rows, dsplit), out_dtype)
                      for _ in range(n_out))
    out_specs = tuple(pl.BlockSpec((tr, dsplit), lambda i: (i, 0))
                      for _ in range(n_out))
    if n_out == 1:
        out_shape, out_specs = out_shape[0], out_specs[0]
    return pl.pallas_call(
        functools.partial(_ln_linear_kernel, eps=eps),
        out_shape=out_shape,
        grid=(pl.cdiv(rows, tr),),
        in_specs=[_row_spec(tr, d),
                  _const_spec((1, d)), _const_spec((1, d)),
                  _const_spec((d, dout_total)), _const_spec((1, dout_total))],
        out_specs=out_specs,
        compiler_params=pltpu.CompilerParams(
            dimension_semantics=("parallel",)),
    )(x2d, a.reshape(1, d), b.reshape(1, d), w, bias.reshape(1, dout_total))


def linear(x2d, w, bias, *, n_out=1, out_dtype=jnp.bfloat16):
    rows, d = x2d.shape
    dout_total = w.shape[1]
    dsplit = dout_total // n_out
    tr = _pick_row_tile(rows)
    out_shape = tuple(jax.ShapeDtypeStruct((rows, dsplit), out_dtype)
                      for _ in range(n_out))
    out_specs = tuple(pl.BlockSpec((tr, dsplit), lambda i: (i, 0))
                      for _ in range(n_out))
    if n_out == 1:
        out_shape, out_specs = out_shape[0], out_specs[0]
    return pl.pallas_call(
        _linear_kernel,
        out_shape=out_shape,
        grid=(pl.cdiv(rows, tr),),
        in_specs=[_row_spec(tr, d),
                  _const_spec((d, dout_total)), _const_spec((1, dout_total))],
        out_specs=out_specs,
        compiler_params=pltpu.CompilerParams(
            dimension_semantics=("parallel",)),
    )(x2d, w, bias.reshape(1, dout_total))


def ln_ffn(x2d, a, b, w1, b1, w2, b2, *, eps=1e-6):
    # TODO(synk): for production d_ff (e.g. 4096) tile w1/w2 over d_ff columns
    # with an "arbitrary" K grid axis so weights + double-buffering fit v7x's
    # 64 MiB VMEM; whole-weight blocks are fine at this toy size.
    rows, d = x2d.shape
    dff = w1.shape[1]
    tr = _pick_row_tile(rows)
    return pl.pallas_call(
        functools.partial(_ln_ffn_kernel, eps=eps),
        out_shape=jax.ShapeDtypeStruct((rows, d), x2d.dtype),
        grid=(pl.cdiv(rows, tr),),
        in_specs=[_row_spec(tr, d),
                  _const_spec((1, d)), _const_spec((1, d)),
                  _const_spec((d, dff)), _const_spec((1, dff)),
                  _const_spec((dff, d)), _const_spec((1, d))],
        out_specs=_row_spec(tr, d),
        compiler_params=pltpu.CompilerParams(
            dimension_semantics=("parallel",)),
    )(x2d, a.reshape(1, d), b.reshape(1, d),
      w1, b1.reshape(1, dff), w2, b2.reshape(1, d))


def attention_block(q, k, v, mask, x, wo, bo, num_heads):
    B, T, D = q.shape
    Tk = k.shape[1]
    return pl.pallas_call(
        functools.partial(_attn_kernel, num_heads=num_heads),
        out_shape=jax.ShapeDtypeStruct((B, T, D), x.dtype),
        grid=(B,),
        in_specs=[
            pl.BlockSpec((1, T, D), lambda b: (b, 0, 0)),
            pl.BlockSpec((1, Tk, D), lambda b: (b, 0, 0)),
            pl.BlockSpec((1, Tk, D), lambda b: (b, 0, 0)),
            pl.BlockSpec((1, T, Tk), lambda b: (b, 0, 0)),   # mask: 1 DMA/batch
            pl.BlockSpec((1, T, D), lambda b: (b, 0, 0)),    # residual input
            pl.BlockSpec((D, D), lambda b: (0, 0)),
            pl.BlockSpec((1, D), lambda b: (0, 0)),
        ],
        out_specs=pl.BlockSpec((1, T, D), lambda b: (b, 0, 0)),
        compiler_params=pltpu.CompilerParams(
            dimension_semantics=("parallel",)),
    )(q, k, v, mask, x, wo, bo.reshape(1, D))


# ----------------------------- decoder layer -----------------------------

def decoder_layer(x, memory, src_mask, tgt_mask, params, *,
                  mxu_dtype=jnp.bfloat16):
    B, T, D = x.shape
    S = memory.shape[1]

    # ---- sublayer 0: self-attention (dropout p=0 -> identity) ----
    sa = params["self_attn"]
    H = sa["h"]
    wqkv = jnp.concatenate([sa["wq"], sa["wk"], sa["wv"]], axis=1).astype(mxu_dtype)
    bqkv = jnp.concatenate([sa["bq"], sa["bk"], sa["bv"]])
    q, k, v = ln_linear(x.reshape(B * T, D), params["ln0_a"], params["ln0_b"],
                        wqkv, bqkv, n_out=3, out_dtype=mxu_dtype)
    x = attention_block(q.reshape(B, T, D), k.reshape(B, T, D),
                        v.reshape(B, T, D), tgt_mask, x,
                        sa["wo"].astype(mxu_dtype), sa["bo"], H)

    # ---- sublayer 1: source attention ----
    ca = params["src_attn"]
    q = ln_linear(x.reshape(B * T, D), params["ln1_a"], params["ln1_b"],
                  ca["wq"].astype(mxu_dtype), ca["bq"],
                  n_out=1, out_dtype=mxu_dtype)
    wkv = jnp.concatenate([ca["wk"], ca["wv"]], axis=1).astype(mxu_dtype)
    bkv = jnp.concatenate([ca["bk"], ca["bv"]])
    k, v = linear(memory.reshape(B * S, D), wkv, bkv,
                  n_out=2, out_dtype=mxu_dtype)
    x = attention_block(q.reshape(B, T, D), k.reshape(B, S, D),
                        v.reshape(B, S, D), src_mask, x,
                        ca["wo"].astype(mxu_dtype), ca["bo"], H)

    # ---- sublayer 2: position-wise feed forward ----
    f = params["ffn"]
    x = ln_ffn(x.reshape(B * T, D), params["ln2_a"], params["ln2_b"],
               f["w1"].astype(mxu_dtype), f["b1"],
               f["w2"].astype(mxu_dtype), f["b2"]).reshape(B, T, D)
    return x


# ----------------------------- pure-JAX reference -----------------------------

def ref_decoder_layer(x, memory, src_mask, tgt_mask, params):
    def ln(x, a, b, eps=1e-6):
        mean = x.mean(-1, keepdims=True)
        var = ((x - mean) ** 2).sum(-1, keepdims=True) / (x.shape[-1] - 1)
        return a * (x - mean) / (jnp.sqrt(var) + eps) + b

    def mha(q_in, kv_in, mask, p):
        B, Tq, D = q_in.shape
        Tk = kv_in.shape[1]
        H, Dk = p["h"], D // p["h"]
        q = (q_in @ p["wq"] + p["bq"]).reshape(B, Tq, H, Dk).transpose(0, 2, 1, 3)
        k = (kv_in @ p["wk"] + p["bk"]).reshape(B, Tk, H, Dk).transpose(0, 2, 1, 3)
        v = (kv_in @ p["wv"] + p["bv"]).reshape(B, Tk, H, Dk).transpose(0, 2, 1, 3)
        scores = jnp.einsum("bhqd,bhkd->bhqk", q, k) / jnp.sqrt(jnp.float32(Dk))
        scores = jnp.where(mask[:, None, :, :] == 0, -1e9, scores)
        pa = jax.nn.softmax(scores, axis=-1)
        ctx = jnp.einsum("bhqk,bhkd->bhqd", pa, v)
        ctx = ctx.transpose(0, 2, 1, 3).reshape(B, Tq, D)
        return ctx @ p["wo"] + p["bo"]

    y = ln(x, params["ln0_a"], params["ln0_b"])
    x = x + mha(y, y, tgt_mask, params["self_attn"])
    y = ln(x, params["ln1_a"], params["ln1_b"])
    x = x + mha(y, memory, src_mask, params["src_attn"])
    y = ln(x, params["ln2_a"], params["ln2_b"])
    ff = jnp.maximum(y @ params["ffn"]["w1"] + params["ffn"]["b1"], 0.0)
    ff = ff @ params["ffn"]["w2"] + params["ffn"]["b2"]
    return x + ff


# ----------------------------- parameter init -----------------------------

def init_params(key, d_model, h, d_ff):
    ks = jax.random.split(key, 8)

    def w(k, shape, scale=0.05):
        return jax.random.normal(k, shape, jnp.float32) * scale

    def attn_params(k4):
        kq, kk, kv, ko = jax.random.split(k4, 4)
        return {
            "h": h,
            "wq": w(kq, (d_model, d_model)), "bq": w(jax.random.fold_in(kq, 1), (d_model,), 0.01),
            "wk": w(kk, (d_model, d_model)), "bk": w(jax.random.fold_in(kk, 1), (d_model,), 0.01),
            "wv": w(kv, (d_model, d_model)), "bv": w(jax.random.fold_in(kv, 1), (d_model,), 0.01),
            "wo": w(ko, (d_model, d_model)), "bo": w(jax.random.fold_in(ko, 1), (d_model,), 0.01),
        }

    return {
        "ln0_a": jnp.ones((d_model,), jnp.float32),
        "ln0_b": jnp.zeros((d_model,), jnp.float32),
        "ln1_a": jnp.ones((d_model,), jnp.float32),
        "ln1_b": jnp.zeros((d_model,), jnp.float32),
        "ln2_a": jnp.ones((d_model,), jnp.float32),
        "ln2_b": jnp.zeros((d_model,), jnp.float32),
        "self_attn": attn_params(ks[0]),
        "src_attn": attn_params(ks[1]),
        "ffn": {
            "w1": w(ks[2], (d_model, d_ff)), "b1": w(ks[3], (d_ff,), 0.01),
            "w2": w(ks[4], (d_ff, d_model)), "b2": w(ks[5], (d_model,), 0.01),
        },
    }


# ----------------------------- main -----------------------------

if __name__ == "__main__":
    B, T, S, D, H, DFF = 2, 8, 10, 32, 4, 64

    key = jax.random.PRNGKey(0)
    k_x, k_m, k_p = jax.random.split(key, 3)

    x = jax.random.normal(k_x, (B, T, D), jnp.float32)
    memory = jax.random.normal(k_m, (B, S, D), jnp.float32)

    # causal target mask [B, T, T]
    tgt_mask = jnp.broadcast_to(jnp.tril(jnp.ones((T, T), jnp.float32)), (B, T, T))
    # source padding mask [B, T, S]: batch 1 has last 3 src positions padded
    src_valid = jnp.stack([
        jnp.ones((S,), jnp.float32),
        jnp.concatenate([jnp.ones((S - 3,)), jnp.zeros((3,))]).astype(jnp.float32),
    ])
    src_mask = jnp.broadcast_to(src_valid[:, None, :], (B, T, S))

    params = init_params(k_p, D, H, DFF)

    out = decoder_layer(x, memory, src_mask, tgt_mask, params)
    out = jax.block_until_ready(out)

    ref = ref_decoder_layer(x, memory, src_mask, tgt_mask, params)
    # bf16 MXU operands (f32 accumulation) vs f32 reference -> loose tolerance
    np.testing.assert_allclose(np.asarray(out), np.asarray(ref),
                               rtol=2e-2, atol=2e-2)

    print("KERNEL_OK")
</pallas_src>

<mosaic_0001>
module attributes {stable_mosaic.version = 11 : i64} {
  func.func @_ln_linear_kernel(%arg0: i32, %arg1: memref<8x32xf32, #tpu.memory_space<vmem>>, %arg2: memref<1x32xf32, #tpu.memory_space<vmem>>, %arg3: memref<1x32xf32, #tpu.memory_space<vmem>>, %arg4: memref<32x96xbf16, #tpu.memory_space<vmem>>, %arg5: memref<1x96xf32, #tpu.memory_space<vmem>>, %arg6: memref<8x32xbf16, #tpu.memory_space<vmem>>, %arg7: memref<8x32xbf16, #tpu.memory_space<vmem>>, %arg8: memref<8x32xbf16, #tpu.memory_space<vmem>>) attributes {dimension_semantics = [#tpu.dimension_semantics<parallel>], iteration_bounds = array<i64: 2>, scalar_prefetch = 0 : i64, scratch_operands = 0 : i64, tpu.core_type = #tpu.core_type<tc>, window_params = [{transform_indices = @transform_0, window_bounds = array<i64: 8, 32>}, {pipeline_mode = #tpu.pipeline_mode<synchronous>, transform_indices = @transform_1, window_bounds = array<i64: 1, 32>}, {pipeline_mode = #tpu.pipeline_mode<synchronous>, transform_indices = @transform_2, window_bounds = array<i64: 1, 32>}, {pipeline_mode = #tpu.pipeline_mode<synchronous>, transform_indices = @transform_3, window_bounds = array<i64: 32, 96>}, {pipeline_mode = #tpu.pipeline_mode<synchronous>, transform_indices = @transform_4, window_bounds = array<i64: 1, 96>}, {transform_indices = @transform_5, window_bounds = array<i64: 8, 32>}, {transform_indices = @transform_6, window_bounds = array<i64: 8, 32>}, {transform_indices = @transform_7, window_bounds = array<i64: 8, 32>}]} {
    %c0 = arith.constant 0 : index
    %c0_0 = arith.constant 0 : index
    %0 = vector.load %arg1[%c0, %c0_0] : memref<8x32xf32, #tpu.memory_space<vmem>>, vector<8x32xf32>
    %c0_1 = arith.constant 0 : index
    %c0_2 = arith.constant 0 : index
    %1 = vector.load %arg2[%c0_1, %c0_2] : memref<1x32xf32, #tpu.memory_space<vmem>>, vector<1x32xf32>
    %c0_3 = arith.constant 0 : index
    %c0_4 = arith.constant 0 : index
    %2 = vector.load %arg3[%c0_3, %c0_4] : memref<1x32xf32, #tpu.memory_space<vmem>>, vector<1x32xf32>
    %cst = arith.constant dense<0.000000e+00> : vector<8xf32>
    %3 = vector.multi_reduction <add>, %0, %cst [1] : vector<8x32xf32> to vector<8xf32>
    %4 = vector.shape_cast %3 : vector<8xf32> to vector<8x1xf32>
    %cst_5 = arith.constant 3.200000e+01 : f32
    %5 = vector.broadcast %cst_5 : f32 to vector<8x1xf32>
    %6 = arith.divf %4, %5 : vector<8x1xf32>
    %7 = vector.broadcast %6 : vector<8x1xf32> to vector<8x32xf32>
    %8 = arith.subf %0, %7 : vector<8x32xf32>
    %9 = arith.mulf %8, %8 : vector<8x32xf32>
    %cst_6 = arith.constant dense<0.000000e+00> : vector<8xf32>
    %10 = vector.multi_reduction <add>, %9, %cst_6 [1] : vector<8x32xf32> to vector<8xf32>
    %11 = vector.shape_cast %10 : vector<8xf32> to vector<8x1xf32>
    %cst_7 = arith.constant 0.0322580636 : f32
    %12 = vector.broadcast %cst_7 : f32 to vector<8x1xf32>
    %13 = arith.mulf %11, %12 : vector<8x1xf32>
    %14 = math.sqrt %13 : vector<8x1xf32>
    %cst_8 = arith.constant 9.99999997E-7 : f32
    %15 = vector.broadcast %cst_8 : f32 to vector<8x1xf32>
    %16 = arith.addf %14, %15 : vector<8x1xf32>
    %17 = tpu.reciprocal %16 {approx = true} : vector<8x1xf32> -> vector<8x1xf32>
    %18 = vector.broadcast %1 : vector<1x32xf32> to vector<8x32xf32>
    %19 = arith.mulf %18, %8 : vector<8x32xf32>
    %20 = vector.broadcast %17 : vector<8x1xf32> to vector<8x32xf32>
    %21 = arith.mulf %19, %20 : vector<8x32xf32>
    %22 = vector.broadcast %2 : vector<1x32xf32> to vector<8x32xf32>
    %23 = arith.addf %21, %22 : vector<8x32xf32>
    %24 = arith.truncf %23 : vector<8x32xf32> to vector<8x32xbf16>
    %c0_9 = arith.constant 0 : index
    %c0_10 = arith.constant 0 : index
    %25 = vector.load %arg4[%c0_9, %c0_10] : memref<32x96xbf16, #tpu.memory_space<vmem>>, vector<32x96xbf16>
    %cst_11 = arith.constant dense<0.000000e+00> : vector<8x96xf32>
    %26 = tpu.matmul %24, %25, %cst_11 {dimension_numbers = #tpu.dot_dimension_numbers<[1], [0], [0], [1], [0, 0, 1, 1], [], []>} : vector<8x32xbf16>, vector<32x96xbf16>, vector<8x96xf32> -> vector<8x96xf32>
    %c0_12 = arith.constant 0 : index
    %c0_13 = arith.constant 0 : index
    %27 = vector.load %arg5[%c0_12, %c0_13] : memref<1x96xf32, #tpu.memory_space<vmem>>, vector<1x96xf32>
    %28 = vector.broadcast %27 : vector<1x96xf32> to vector<8x96xf32>
    %29 = arith.addf %26, %28 : vector<8x96xf32>
    %30 = vector.extract_strided_slice %29 {offsets = [0, 0], sizes = [8, 32], strides = [1, 1]} : vector<8x96xf32> to vector<8x32xf32>
    %31 = arith.truncf %30 : vector<8x32xf32> to vector<8x32xbf16>
    %c0_14 = arith.constant 0 : index
    %c0_15 = arith.constant 0 : index
    %32 = vector.load %arg6[%c0_14, %c0_15] : memref<8x32xbf16, #tpu.memory_space<vmem>>, vector<8x32xbf16>
    tpu.vector_store %arg6[%c0_14, %c0_15], %31 {strides = array<i32>} : memref<8x32xbf16, #tpu.memory_space<vmem>>, vector<8x32xbf16>,
    %33 = vector.extract_strided_slice %29 {offsets = [0, 32], sizes = [8, 32], strides = [1, 1]} : vector<8x96xf32> to vector<8x32xf32>
    %34 = arith.truncf %33 : vector<8x32xf32> to vector<8x32xbf16>
    %c0_16 = arith.constant 0 : index
    %c0_17 = arith.constant 0 : index
    %35 = vector.load %arg7[%c0_16, %c0_17] : memref<8x32xbf16, #tpu.memory_space<vmem>>, vector<8x32xbf16>
    tpu.vector_store %arg7[%c0_16, %c0_17], %34 {strides = array<i32>} : memref<8x32xbf16, #tpu.memory_space<vmem>>, vector<8x32xbf16>,
    %36 = vector.extract_strided_slice %29 {offsets = [0, 64], sizes = [8, 32], strides = [1, 1]} : vector<8x96xf32> to vector<8x32xf32>
    %37 = arith.truncf %36 : vector<8x32xf32> to vector<8x32xbf16>
    %c0_18 = arith.constant 0 : index
    %c0_19 = arith.constant 0 : index
    %38 = vector.load %arg8[%c0_18, %c0_19] : memref<8x32xbf16, #tpu.memory_space<vmem>>, vector<8x32xbf16>
    tpu.vector_store %arg8[%c0_18, %c0_19], %37 {strides = array<i32>} : memref<8x32xbf16, #tpu.memory_space<vmem>>, vector<8x32xbf16>,
    return
  }
  func.func @transform_0(%arg0: i32) -> (i32, i32) {
    %c0_i32 = arith.constant 0 : i32
    %c0_i32_0 = arith.constant 0 : i32
    return %arg0, %c0_i32 : i32, i32
  }
  func.func @transform_1(%arg0: i32) -> (i32, i32) {
    %c0_i32 = arith.constant 0 : i32
    %c0_i32_0 = arith.constant 0 : i32
    %c0_i32_1 = arith.constant 0 : i32
    return %c0_i32, %c0_i32_0 : i32, i32
  }
  func.func @transform_2(%arg0: i32) -> (i32, i32) {
    %c0_i32 = arith.constant 0 : i32
    %c0_i32_0 = arith.constant 0 : i32
    %c0_i32_1 = arith.constant 0 : i32
    return %c0_i32, %c0_i32_0 : i32, i32
  }
  func.func @transform_3(%arg0: i32) -> (i32, i32) {
    %c0_i32 = arith.constant 0 : i32
    %c0_i32_0 = arith.constant 0 : i32
    %c0_i32_1 = arith.constant 0 : i32
    return %c0_i32, %c0_i32_0 : i32, i32
  }
  func.func @transform_4(%arg0: i32) -> (i32, i32) {
    %c0_i32 = arith.constant 0 : i32
    %c0_i32_0 = arith.constant 0 : i32
    %c0_i32_1 = arith.constant 0 : i32
    return %c0_i32, %c0_i32_0 : i32, i32
  }
  func.func @transform_5(%arg0: i32) -> (i32, i32) {
    %c0_i32 = arith.constant 0 : i32
    %c0_i32_0 = arith.constant 0 : i32
    return %arg0, %c0_i32 : i32, i32
  }
  func.func @transform_6(%arg0: i32) -> (i32, i32) {
    %c0_i32 = arith.constant 0 : i32
    %c0_i32_0 = arith.constant 0 : i32
    return %arg0, %c0_i32 : i32, i32
  }
  func.func @transform_7(%arg0: i32) -> (i32, i32) {
    %c0_i32 = arith.constant 0 : i32
    %c0_i32_0 = arith.constant 0 : i32
    return %arg0, %c0_i32 : i32, i32
  }
}

</mosaic_0001>

<llo_original>
// kernel: tpu_custom_call.1
$region0: #{tpu_custom_call.1}
  #allocation0 [shape = 'u32[]', space=smem, size = 0x4, offset = 0x4, fixed_abs, tag = 'smem constant byte address 0x4 - core index']
  #allocation1 [shape = 'u32[144,128]{1,0:T(1,128)}', space=vmem, size = 0x12000, scoped, tag = 'internal scratch']
  %s0 = inlined_call_operand.hbm [shape: f32[16,32], index: 0, kind: input, shape index: {}]
  %s1 = inlined_call_operand.vmem [shape: f32[1,32], index: 1, kind: input, shape index: {}]
  %s2 = inlined_call_operand.vmem [shape: f32[1,32], index: 2, kind: input, shape index: {}]
  %s3 = inlined_call_operand.hbm [shape: bf16[32,96], index: 3, kind: input, shape index: {}]
  %s4 = inlined_call_operand.vmem [shape: f32[1,96], index: 4, kind: input, shape index: {}]
  %s5 = inlined_call_operand.hbm [shape: bf16[16,32], index: 5, kind: output, shape index: {0}]
  %s6 = inlined_call_operand.hbm [shape: bf16[16,32], index: 6, kind: output, shape index: {1}]
  %s7 = inlined_call_operand.hbm [shape: bf16[16,32], index: 7, kind: output, shape index: {2}]
  %8 = xla_tuple %s5, %s6, %s7
  %s9 = sld [smem:[#allocation0]]
  $region77: #{tpu_custom_call.1} parent=0
    _
  %s11 = ssub.s32 1, %s9
  %s12 = scalar_select 0, %s11, %s9
  $region1: #{tpu_custom_call.1} parent=0
    #allocation2 [shape = 'u8[8192]{0}', space=vmem, size = 0x2000, scoped, tag = 'input window, operand 0']
    #allocation3 [shape = 's32[2]{0}', space=sflag, size = 0x8, scoped, tag = 'scoped memory for tpu_custom_call.1']
    #allocation4 [shape = 's32[2]{0}', space=sflag, size = 0x8, scoped, tag = 'scoped memory for tpu_custom_call.1']
    #allocation5 [shape = 'u8[8192]{0}', space=vmem, size = 0x2000, scoped, tag = 'input window, operand 3, single buffered']
    #allocation6 [shape = 's32[1]{0}', space=sflag, size = 0x4, scoped, tag = 'scoped memory for tpu_custom_call.1']
    #allocation7 [shape = 'u8[4096]{0}', space=vmem, size = 0x1000, scoped, tag = 'output window, operand 0']
    #allocation8 [shape = 'u8[4096]{0}', space=vmem, size = 0x1000, scoped, tag = 'output window, operand 1']
    #allocation9 [shape = 's32[2]{0}', space=sflag, size = 0x8, scoped, tag = 'scoped memory for tpu_custom_call.1']
    #allocation10 [shape = 'u8[4096]{0}', space=vmem, size = 0x1000, scoped, tag = 'output window, operand 2']
    %13 = vsyncpa [#allocation3], 0
    %s14 = scalar_lea.sflag [#allocation3], 1
    %15 = vsyncpa %s14, 0
    %16 = vsyncpa [#allocation6], 0
    %17 = vsyncpa [#allocation4], 0
    %s18 = scalar_lea.sflag [#allocation4], 1
    %19 = vsyncpa %s18, 0
    %20 = vsyncpa [#allocation9], 0
    %s21 = scalar_lea.sflag [#allocation9], 1
    %22 = vsyncpa %s21, 0
    loop: start=0, step=1, limit=4
    $region2: #{tpu_custom_call.1} parent=1 // loop_pre_header
      _
    $region3: #{tpu_custom_call.1} parent=1 // loop_header
      %s24 = sphi 0, %s28
      %p25 = scmp.ge.s32.totalorder %s24, 4
      %s34 = sphi 0, %s36
      %s37 = sphi 0, %s34
      %s38 = sphi 0, %s37
      %s54 = sphi 0, %s38
      %s58 = sphi 0, %s58
      %s60 = sphi 0, %s58
      %s61 = sphi 0, %s60
      %s75 = sphi 0, %s61
      %s79 = sphi 0, %s79
      %s81 = sphi 0, %s79
      %s82 = sphi 0, %s81
      %s96 = sphi 0, %s82
      %s100 = sphi 0, %s100
      %s102 = sphi 0, %s100
      %s103 = sphi 0, %s102
      %s117 = sphi 0, %s103
      %s121 = sphi 0, %s121
      %s123 = sphi 0, %s121
      %s124 = sphi 0, %s123
      %s138 = sphi 0, %s124
      %s144 = sphi 0, %s146
      %s147 = sphi 0, %s144
      %s148 = sphi 0, %s147
      %s164 = sphi 0, %s148
      %s170 = sphi 0, %s172
      %s173 = sphi 0, %s170
      %s174 = sphi 0, %s173
      %s190 = sphi 0, %s174
      %s196 = sphi 0, %s198
      %s199 = sphi 0, %s196
      %s200 = sphi 0, %s199
      %s216 = sphi 0, %s200
    $region4: #{tpu_custom_call.1} parent=1 // loop_header_branch
      %27 = sbr.rel (%p25) target = $region8
    $region5: #{tpu_custom_call.1} parent=1 // loop_body
      %s29 = ssub.s32 %s24, 1
      %s30 = ssub.s32 %s24, 2
      %s31 = sadd.s32 %s24, 1
      %s32 = ssub.s32 %s24, %s31
      %p33 = scmp.eq.s32.totalorder %s32, 0
      %s35 = sadd.s32 %s34, 1
      %s36 = scalar_select %p33, %s34, %s35
      %p39 = pneg %p33
      %p40 = scmp.eq.s32.totalorder %s24, 1
      %p41 = por %p39, %p40
      %p42 = scmp.ne.s32.totalorder %s34, %s37
      %p43 = scmp.eq.s32.totalorder %s24, 0
      %p44 = por %p42, %p43
      %p45 = scmp.ne.s32.totalorder %s34, %s37
      %p46 = scmp.eq.s32.totalorder %s29, 1
      %p47 = por %p45, %p46
      %p48 = scmp.ne.s32.totalorder %s37, %s38
      %p49 = scmp.eq.s32.totalorder %s29, 0
      %p50 = por %p48, %p49
      %p51 = scmp.ne.s32.totalorder %s37, %s38
      %p52 = scmp.eq.s32.totalorder %s30, 1
      %p53 = por %p51, %p52
      %p55 = scmp.ne.s32.totalorder %s38, %s54
      %p56 = scmp.eq.s32.totalorder %s30, 0
      %p57 = por %p55, %p56
      %s59 = sadd.s32 %s58, 1
      %p62 = scmp.eq.s32.totalorder %s24, 1
      %p63 = scmp.ne.s32.totalorder %s58, %s60
      %p64 = scmp.eq.s32.totalorder %s24, 0
      %p65 = por %p63, %p64
      %p66 = scmp.ne.s32.totalorder %s58, %s60
      %p67 = scmp.eq.s32.totalorder %s29, 1
      %p68 = por %p66, %p67
      %p69 = scmp.ne.s32.totalorder %s60, %s61
      %p70 = scmp.eq.s32.totalorder %s29, 0
      %p71 = por %p69, %p70
      %p72 = scmp.ne.s32.totalorder %s60, %s61
      %p73 = scmp.eq.s32.totalorder %s30, 1
      %p74 = por %p72, %p73
      %p76 = scmp.ne.s32.totalorder %s61, %s75
      %p77 = scmp.eq.s32.totalorder %s30, 0
      %p78 = por %p76, %p77
      %s80 = sadd.s32 %s79, 1
      %p83 = scmp.eq.s32.totalorder %s24, 1
      %p84 = scmp.ne.s32.totalorder %s79, %s81
      %p85 = scmp.eq.s32.totalorder %s24, 0
      %p86 = por %p84, %p85
      %p87 = scmp.ne.s32.totalorder %s79, %s81
      %p88 = scmp.eq.s32.totalorder %s29, 1
      %p89 = por %p87, %p88
      %p90 = scmp.ne.s32.totalorder %s81, %s82
      %p91 = scmp.eq.s32.totalorder %s29, 0
      %p92 = por %p90, %p91
      %p93 = scmp.ne.s32.totalorder %s81, %s82
      %p94 = scmp.eq.s32.totalorder %s30, 1
      %p95 = por %p93, %p94
      %p97 = scmp.ne.s32.totalorder %s82, %s96
      %p98 = scmp.eq.s32.totalorder %s30, 0
      %p99 = por %p97, %p98
      %s101 = sadd.s32 %s100, 1
      %p104 = scmp.eq.s32.totalorder %s24, 1
      %p105 = scmp.ne.s32.totalorder %s100, %s102
      %p106 = scmp.eq.s32.totalorder %s24, 0
      %p107 = por %p105, %p106
      %p108 = scmp.ne.s32.totalorder %s100, %s102
      %p109 = scmp.eq.s32.totalorder %s29, 1
      %p110 = por %p108, %p109
      %p111 = scmp.ne.s32.totalorder %s102, %s103
      %p112 = scmp.eq.s32.totalorder %s29, 0
      %p113 = por %p111, %p112
      %p114 = scmp.ne.s32.totalorder %s102, %s103
      %p115 = scmp.eq.s32.totalorder %s30, 1
      %p116 = por %p114, %p115
      %p118 = scmp.ne.s32.totalorder %s103, %s117
      %p119 = scmp.eq.s32.totalorder %s30, 0
      %p120 = por %p118, %p119
      %s122 = sadd.s32 %s121, 1
      %p125 = scmp.eq.s32.totalorder %s24, 1
      %p126 = scmp.ne.s32.totalorder %s121, %s123
      %p127 = scmp.eq.s32.totalorder %s24, 0
      %p128 = por %p126, %p127
      %p129 = scmp.ne.s32.totalorder %s121, %s123
      %p130 = scmp.eq.s32.totalorder %s29, 1
      %p131 = por %p129, %p130
      %p132 = scmp.ne.s32.totalorder %s123, %s124
      %p133 = scmp.eq.s32.totalorder %s29, 0
      %p134 = por %p132, %p133
      %p135 = scmp.ne.s32.totalorder %s123, %s124
      %p136 = scmp.eq.s32.totalorder %s30, 1
      %p137 = por %p135, %p136
      %p139 = scmp.ne.s32.totalorder %s124, %s138
      %p140 = scmp.eq.s32.totalorder %s30, 0
      %p141 = por %p139, %p140
      %s142 = ssub.s32 %s24, %s31
      %p143 = scmp.eq.s32.totalorder %s142, 0
      %s145 = sadd.s32 %s144, 1
      %s146 = scalar_select %p143, %s144, %s145
      %p149 = pneg %p143
      %p150 = scmp.eq.s32.totalorder %s24, 1
      %p151 = por %p149, %p150
      %p152 = scmp.ne.s32.totalorder %s144, %s147
      %p153 = scmp.eq.s32.totalorder %s24, 0
      %p154 = por %p152, %p153
      %p155 = scmp.ne.s32.totalorder %s144, %s147
      %p156 = scmp.eq.s32.totalorder %s29, 1
      %p157 = por %p155, %p156
      %p158 = scmp.ne.s32.totalorder %s147, %s148
      %p159 = scmp.eq.s32.totalorder %s29, 0
      %p160 = por %p158, %p159
      %p161 = scmp.ne.s32.totalorder %s147, %s148
      %p162 = scmp.eq.s32.totalorder %s30, 1
      %p163 = por %p161, %p162
      %p165 = scmp.ne.s32.totalorder %s148, %s164
      %p166 = scmp.eq.s32.totalorder %s30, 0
      %p167 = por %p165, %p166
      %s168 = ssub.s32 %s24, %s31
      %p169 = scmp.eq.s32.totalorder %s168, 0
      %s171 = sadd.s32 %s170, 1
      %s172 = scalar_select %p169, %s170, %s171
      %p175 = pneg %p169
      %p176 = scmp.eq.s32.totalorder %s24, 1
      %p177 = por %p175, %p176
      %p178 = scmp.ne.s32.totalorder %s170, %s173
      %p179 = scmp.eq.s32.totalorder %s24, 0
      %p180 = por %p178, %p179
      %p181 = scmp.ne.s32.totalorder %s170, %s173
      %p182 = scmp.eq.s32.totalorder %s29, 1
      %p183 = por %p181, %p182
      %p184 = scmp.ne.s32.totalorder %s173, %s174
      %p185 = scmp.eq.s32.totalorder %s29, 0
      %p186 = por %p184, %p185
      %p187 = scmp.ne.s32.totalorder %s173, %s174
      %p188 = scmp.eq.s32.totalorder %s30, 1
      %p189 = por %p187, %p188
      %p191 = scmp.ne.s32.totalorder %s174, %s190
      %p192 = scmp.eq.s32.totalorder %s30, 0
      %p193 = por %p191, %p192
      %s194 = ssub.s32 %s24, %s31
      %p195 = scmp.eq.s32.totalorder %s194, 0
      %s197 = sadd.s32 %s196, 1
      %s198 = scalar_select %p195, %s196, %s197
      %p201 = pneg %p195
      %p202 = scmp.eq.s32.totalorder %s24, 1
      %p203 = por %p201, %p202
      %p204 = scmp.ne.s32.totalorder %s196, %s199
      %p205 = scmp.eq.s32.totalorder %s24, 0
      %p206 = por %p204, %p205
      %p207 = scmp.ne.s32.totalorder %s196, %s199
      %p208 = scmp.eq.s32.totalorder %s29, 1
      %p209 = por %p207, %p208
      %p210 = scmp.ne.s32.totalorder %s199, %s200
      %p211 = scmp.eq.s32.totalorder %s29, 0
      %p212 = por %p210, %p211
      %p213 = scmp.ne.s32.totalorder %s199, %s200
      %p214 = scmp.eq.s32.totalorder %s30, 1
      %p215 = por %p213, %p214
      %p217 = scmp.ne.s32.totalorder %s200, %s216
      %p218 = scmp.eq.s32.totalorder %s30, 0
      %p219 = por %p217, %p218
      %p220 = scmp.le.s32.totalorder 1, %s24
      %p221 = scmp.lt.s32.totalorder %s24, 3
      %p222 = pnand %p220, %p221
      %p223 = pneg %p222
      // Predicated region
      $region9: #{tpu_custom_call.1} parent=5 // pred_check
        _
      $region10: #{tpu_custom_call.1} parent=5 // pred_check_branch
        %225 = sbr.rel (%p222) target = $region12
      $region11: #{tpu_custom_call.1} parent=5 // pred_region
        %s226 = ssub.s32 %s24, 1
        // Predicated region
        $region13: #{tpu_custom_call.1} parent=11 // pred_check
          %p227 = pneg %p71
        $region14: #{tpu_custom_call.1} parent=11 // pred_check_branch
          %229 = sbr.rel (%p227) target = $region16
        $region15: #{tpu_custom_call.1} parent=11 // pred_region
          _
        $region16: #{tpu_custom_call.1} parent=11 // pred_fallthru
          _
        // Predicated region
        $region17: #{tpu_custom_call.1} parent=11 // pred_check
          %p230 = pneg %p92
        $region18: #{tpu_custom_call.1} parent=11 // pred_check_branch
          %232 = sbr.rel (%p230) target = $region20
        $region19: #{tpu_custom_call.1} parent=11 // pred_region
          _
        $region20: #{tpu_custom_call.1} parent=11 // pred_fallthru
          _
        // Predicated region
        $region21: #{tpu_custom_call.1} parent=11 // pred_check
          %p233 = pneg %p113
        $region22: #{tpu_custom_call.1} parent=11 // pred_check_branch
          %235 = sbr.rel (%p233) target = $region24
        $region23: #{tpu_custom_call.1} parent=11 // pred_region
          %s237 = ssub.s32 256, 256
          %238 = vsyncadd [#allocation6], %s237
          %s239 = sshll.u32 [#allocation5], 4
          %s240 = int_to_ptr.vmem [resolvable:$true] %s239
          %245 = dma.hbm_to_vmem [thread:$0]  %s3, 256, %s240, [#allocation6], 64, 64, 4
        $region24: #{tpu_custom_call.1} parent=11 // pred_fallthru
          _
        // Predicated region
        $region25: #{tpu_custom_call.1} parent=11 // pred_check
          %p246 = pneg %p134
        $region26: #{tpu_custom_call.1} parent=11 // pred_check_branch
          %248 = sbr.rel (%p246) target = $region28
        $region27: #{tpu_custom_call.1} parent=11 // pred_region
          _
        $region28: #{tpu_custom_call.1} parent=11 // pred_fallthru
          _
      $region12: #{tpu_custom_call.1} parent=5 // pred_fallthru
        _
      %p249 = scmp.lt.s32.totalorder %s24, 2
      // Predicated region
      $region29: #{tpu_custom_call.1} parent=5 // pred_check
        %p250 = pneg %p249
      $region30: #{tpu_custom_call.1} parent=5 // pred_check_branch
        %252 = sbr.rel (%p250) target = $region32
      $region31: #{tpu_custom_call.1} parent=5 // pred_region
        // Predicated region
        $region33: #{tpu_custom_call.1} parent=31 // pred_check
          %p253 = pneg %p44
        $region34: #{tpu_custom_call.1} parent=31 // pred_check_branch
          %255 = sbr.rel (%p253) target = $region36
        $region35: #{tpu_custom_call.1} parent=31 // pred_region
          %s256 = sand.u32 %s34, 1
          %s257 = scalar_lea.sflag [#allocation3], %s256
          %s258 = sand.u32 %s34, 1
          %s259 = smul.addr %s258, 8
          %s260 = scalar_lea.vmem [#allocation2], %s259
          %s262 = ssub.s32 128, 128
          %263 = vsyncadd %s257, %s262
          %s264 = smul.addr %s24, 128
          %s265 = scalar_lea.hbm %s0, %s264
          %s267 = sshll.u32 %s260, 4
          %s268 = int_to_ptr.vmem [resolvable:$true] %s267
          %270 = dma.hbm_to_vmem [thread:$0]  %s265, 128, %s268, %s257
        $region36: #{tpu_custom_call.1} parent=31 // pred_fallthru
          _
      $region32: #{tpu_custom_call.1} parent=5 // pred_fallthru
        _
      %p271 = scmp.le.s32.totalorder 1, %s24
      %p272 = scmp.lt.s32.totalorder %s24, 3
      %p273 = pnand %p271, %p272
      %p274 = pneg %p273
      // Predicated region
      $region37: #{tpu_custom_call.1} parent=5 // pred_check
        _
      $region38: #{tpu_custom_call.1} parent=5 // pred_check_branch
        %276 = sbr.rel (%p273) target = $region40
      $region39: #{tpu_custom_call.1} parent=5 // pred_region
        %s277 = ssub.s32 %s24, 1
        %s278 = sand.u32 %s37, 1
        %s279 = scalar_lea.sflag [#allocation3], %s278
        %s280 = sand.u32 %s37, 1
        %s281 = smul.addr %s280, 8
        %s282 = scalar_lea.vmem [#allocation2], %s281
        // Predicated region
        $region41: #{tpu_custom_call.1} parent=39 // pred_check
          %p283 = pneg %p50
        $region42: #{tpu_custom_call.1} parent=39 // pred_check_branch
          %285 = sbr.rel (%p283) target = $region44
        $region43: #{tpu_custom_call.1} parent=39 // pred_region
          %286 = dma.done %s279, 128
        $region44: #{tpu_custom_call.1} parent=39 // pred_fallthru
          _
        // Predicated region
        $region45: #{tpu_custom_call.1} parent=39 // pred_check
          %p287 = pneg %p113
        $region46: #{tpu_custom_call.1} parent=39 // pred_check_branch
          %289 = sbr.rel (%p287) target = $region48
        $region47: #{tpu_custom_call.1} parent=39 // pred_region
          %290 = dma.done [#allocation6], 256
        $region48: #{tpu_custom_call.1} parent=39 // pred_fallthru
          _
        %s291 = sand.u32 %s37, 1
        %s292 = scalar_lea.sflag [#allocation3], %s291
        %s293 = sand.u32 %s37, 1
        %s294 = smul.addr %s293, 8
        %s295 = scalar_lea.vmem [#allocation2], %s294
        %p296 = pneg %p50
        %p297 = pneg %p47
        %p298 = pneg %p71
        %p299 = pneg %p68
        %p300 = pneg %p92
        %p301 = pneg %p89
        %p302 = pneg %p113
        %p303 = pneg %p110
        %p304 = pneg %p134
        %p305 = pneg %p131
        %p306 = pneg %p160
        %p307 = pneg %p157
        %s308 = sand.u32 %s147, 1
        %s309 = scalar_lea.sflag [#allocation4], %s308
        %s310 = sand.u32 %s147, 1
        %s311 = smul.addr %s310, 4
        %s312 = scalar_lea.vmem [#allocation7], %s311
        %p313 = pneg %p186
        %p314 = pneg %p183
        %s315 = sand.u32 %s29, 1
        %s316 = scalar_lea.sflag [#allocation9], %s315
        %s317 = sand.u32 %s173, 1
        %s318 = smul.addr %s317, 4
        %s319 = scalar_lea.vmem [#allocation8], %s318
        %p320 = pneg %p212
        %p321 = pneg %p209
        %s322 = sand.u32 %s29, 1
        %s323 = scalar_lea.sflag [#allocation9], %s322
        %s324 = sand.u32 %s199, 1
        %s325 = smul.addr %s324, 4
        %s326 = scalar_lea.vmem [#allocation10], %s325
        %v328 = vld [vmem:[%s282] sm:$0xff]
        %v329 = vld [vmem:[%s1] sm:$0x1]
        %v330 = vld [vmem:[%s2] sm:$0x1]
        %vm331 = vcmask 261120
        %v332 = vsel %vm331, %v328, 0.0
        %333 = vadd.xlane.f32.xlu0 %v332
        %v334 = vpop.xlane.xlu0 %333
        %v335 = vrcp.pop 32.0
        %v336 = vmul.f32 %v334, %v335
        %v337 = vsub.f32 %v328, %v336
        %v338 = vmul.f32 %v337, %v337
        %v339 = vsel %vm331, %v338, 0.0
        %340 = vadd.xlane.f32.xlu0 %v339
        %v341 = vpop.xlane.xlu0 %340
        %v342 = vmul.f32 %v341, 0.032258064
        %v343 = vrsqrt.pop %v342
        %v344 = vmul.f32 %v342, %v343
        %vm345 = vcmp.eq.f32.partialorder %v342, inf
        %v346 = vsel %vm345, %v342, %v344
        %vm347 = vcmp.eq.f32.partialorder %v342, 0.0
        %v348 = vand.u32 %v342, 2147483648
        %v349 = vsel %vm347, %v348, %v346
        %v350 = vadd.f32 %v349, 1e-06
        %v351 = vrcp.pop %v350
        %v353 = vlaneseq
        %v354 = vshrl.u32 %v353, 7
        %v355 = vsub.s32 0, %v354
        %v356 = vrot.slane %v329, %v355
        %v358 = vmul.f32 %v356, %v337
        %v359 = vmul.f32 %v358, %v351
        %v361 = vlaneseq
        %v362 = vshrl.u32 %v361, 7
        %v363 = vsub.s32 0, %v362
        %v364 = vrot.slane %v330, %v363
        %v366 = vadd.f32 %v359, %v364
        %v367 = vpack.c.bf16 %v366, %v366
        %v368 = vld [vmem:[#allocation5] sm:$0xf]
        %v369 = vld [vmem:[#allocation5 + $0x4] sm:$0xf]
        %v370 = vld [vmem:[#allocation5 + $0x8] sm:$0xf]
        %v371 = vld [vmem:[#allocation5 + $0xc] sm:$0xf]
        %v372 = vld [vmem:[%s4] sm:$0x1]
        %v374 = vlaneseq
        %v375 = vshrl.u32 %v374, 7
        %v376 = vsub.s32 0, %v375
        %v377 = vrot.slane %v372, %v376
        %v383 = vunpack.c.l.b16 %v368
        %v384 = vunpack.c.l.b16 %v369
        %v385 = vunpack.c.l.b16 %v370
        %v386 = vunpack.c.l.b16 %v371
        %v387 = vpack.c.b16 %v384, %v383
        %v388 = vpack.c.b16 %v386, %v385
        %v392 = vsel %vm331, %v367, 0
        %394 = vmatprep.subr.bf16.mxu0 0
        %395 = vmatpush1.bf16.msra.mxu0 %v387
        %396 = vmatprep.subr.bf16.mxu0 0
        %397 = vmatpush1.bf16.msra.mxu0 %v388
        %398 = vmatprep.subr.bf16.mxu0 0
        %399 = vmatpush1.bf16.msra.mxu0 0
        %400 = vmatprep.subr.bf16.mxu0 0
        %401 = vmatpush1.bf16.msra.mxu0 0
        %402 = vmatprep.subr.bf16.mxu0 0
        %403 = vmatpush1.bf16.msra.mxu0 0
        %404 = vmatprep.subr.bf16.mxu0 0
        %405 = vmatpush1.bf16.msra.mxu0 0
        %406 = vmatprep.subr.bf16.mxu0 0
        %407 = vmatpush1.bf16.msra.mxu0 0
        %408 = vmatprep.subr.bf16.mxu0 0
        %409 = vmatpush1.bf16.msra.mxu0 0
        %410 = vmatprep.subr.bf16.mxu0 0
        %411 = vmatpush1.bf16.msra.mxu0 0
        %412 = vmatprep.subr.bf16.mxu0 0
        %413 = vmatpush1.bf16.msra.mxu0 0
        %414 = vmatprep.subr.bf16.mxu0 0
        %415 = vmatpush1.bf16.msra.mxu0 0
        %416 = vmatprep.subr.bf16.mxu0 0
        %417 = vmatpush1.bf16.msra.mxu0 0
        %418 = vmatprep.subr.bf16.mxu0 0
        %419 = vmatpush1.bf16.msra.mxu0 0
        %420 = vmatprep.subr.bf16.mxu0 0
        %421 = vmatpush1.bf16.msra.mxu0 0
        %422 = vmatprep.subr.bf16.mxu0 0
        %423 = vmatpush1.bf16.msra.mxu0 0
        %424 = vmatprep.subr.bf16.mxu0 0
        %425 = vmatpush1.bf16.msra.mxu0 0
        %426 = vmatprep.mubr.bf16.mxu0 0
        %427 = vmatmul.mubr.bf16.gmra.mrb[0].mxu0 %v392
        %v428 = vpop.f32.mrb[0].mxu0
        %v429 = vadd.f32 %v377, %v428
        %v430 = vpop.f32.mrb[0].mxu0
        %v431 = vpop.f32.mrb[0].mxu0
        %v432 = vpop.f32.mrb[0].mxu0
        %433 = vdwg.mxu0
        %v434 = vpack.c.bf16 %v429, %v429
        %vm435 = vcmask 257024
        %436 = vst.msk [vmem:[%s312] sm:$0xf] %vm435, %v434
        %v438 = vunpack.c.l.b16 %v434
        %v439 = vpack.c.b16 %v438, %v438
        %440 = vrot.lane.b32.xlu0 %v439, 96
        %v441 = vpop.permute.xlu0 %440
        %443 = vst.msk [vmem:[%s319] sm:$0xf] %vm435, %v441
        %444 = vrot.lane.b32.xlu0 %v439, 64
        %v445 = vpop.permute.xlu0 %444
        %447 = vst.msk [vmem:[%s326] sm:$0xf] %vm435, %v445
        %s448 = sand.u32 %s147, 1
        %s449 = scalar_lea.sflag [#allocation4], %s448
        %s450 = sand.u32 %s147, 1
        %s451 = smul.addr %s450, 4
        %s452 = scalar_lea.vmem [#allocation7], %s451
        %s453 = sand.u32 %s29, 1
        %s454 = scalar_lea.sflag [#allocation9], %s453
        %s455 = sand.u32 %s173, 1
        %s456 = smul.addr %s455, 4
        %s457 = scalar_lea.vmem [#allocation8], %s456
        %s458 = sand.u32 %s29, 1
        %s459 = scalar_lea.sflag [#allocation9], %s458
        %s460 = sand.u32 %s199, 1
        %s461 = smul.addr %s460, 4
        %s462 = scalar_lea.vmem [#allocation10], %s461
        // Predicated region
        $region49: #{tpu_custom_call.1} parent=39 // pred_check
          %p463 = pneg %p157
        $region50: #{tpu_custom_call.1} parent=39 // pred_check_branch
          %465 = sbr.rel (%p463) target = $region52
        $region51: #{tpu_custom_call.1} parent=39 // pred_region
          %s467 = ssub.s32 64, 64
          %468 = vsyncadd %s449, %s467
          %s469 = smul.addr %s29, 64
          %s470 = scalar_lea.hbm %s5, %s469
          %s472 = sshll.u32 %s452, 4
          %s473 = int_to_ptr.vmem [resolvable:$true] %s472
          %475 = dma.vmem_to_hbm [thread:$0]  %s473, 64, %s470, %s449
        $region52: #{tpu_custom_call.1} parent=39 // pred_fallthru
          _
        // Predicated region
        $region53: #{tpu_custom_call.1} parent=39 // pred_check
          %p476 = pneg %p183
        $region54: #{tpu_custom_call.1} parent=39 // pred_check_branch
          %478 = sbr.rel (%p476) target = $region56
        $region55: #{tpu_custom_call.1} parent=39 // pred_region
          %s480 = ssub.s32 64, 64
          %481 = vsyncadd %s454, %s480
          %s482 = smul.addr %s29, 64
          %s483 = scalar_lea.hbm %s6, %s482
          %s485 = sshll.u32 %s457, 4
          %s486 = int_to_ptr.vmem [resolvable:$true] %s485
          %488 = dma.vmem_to_hbm [thread:$0]  %s486, 64, %s483, %s454
        $region56: #{tpu_custom_call.1} parent=39 // pred_fallthru
          _
        // Predicated region
        $region57: #{tpu_custom_call.1} parent=39 // pred_check
          %p489 = pneg %p209
        $region58: #{tpu_custom_call.1} parent=39 // pred_check_branch
          %491 = sbr.rel (%p489) target = $region60
        $region59: #{tpu_custom_call.1} parent=39 // pred_region
          %s493 = ssub.s32 64, 64
          %494 = vsyncadd %s459, %s493
          %s495 = smul.addr %s29, 64
          %s496 = scalar_lea.hbm %s7, %s495
          %s498 = sshll.u32 %s462, 4
          %s499 = int_to_ptr.vmem [resolvable:$true] %s498
          %501 = dma.vmem_to_hbm [thread:$0]  %s499, 64, %s496, %s459
        $region60: #{tpu_custom_call.1} parent=39 // pred_fallthru
          _
      $region40: #{tpu_custom_call.1} parent=5 // pred_fallthru
        _
      %p502 = scmp.le.s32.totalorder 2, %s24
      // Predicated region
      $region61: #{tpu_custom_call.1} parent=5 // pred_check
        %p503 = pneg %p502
      $region62: #{tpu_custom_call.1} parent=5 // pred_check_branch
        %505 = sbr.rel (%p503) target = $region64
      $region63: #{tpu_custom_call.1} parent=5 // pred_region
        %s506 = ssub.s32 %s24, 2
        // Predicated region
        $region65: #{tpu_custom_call.1} parent=63 // pred_check
          %p507 = pneg %p163
        $region66: #{tpu_custom_call.1} parent=63 // pred_check_branch
          %509 = sbr.rel (%p507) target = $region68
        $region67: #{tpu_custom_call.1} parent=63 // pred_region
          %s510 = sand.u32 %s148, 1
          %s511 = scalar_lea.sflag [#allocation4], %s510
          %s512 = sand.u32 %s148, 1
          %s513 = smul.addr %s512, 4
          %s514 = scalar_lea.vmem [#allocation7], %s513
          %515 = dma.done %s511, 64
        $region68: #{tpu_custom_call.1} parent=63 // pred_fallthru
          _
        // Predicated region
        $region69: #{tpu_custom_call.1} parent=63 // pred_check
          %p516 = pneg %p189
        $region70: #{tpu_custom_call.1} parent=63 // pred_check_branch
          %518 = sbr.rel (%p516) target = $region72
        $region71: #{tpu_custom_call.1} parent=63 // pred_region
          %s519 = sand.u32 %s30, 1
          %s520 = scalar_lea.sflag [#allocation9], %s519
          %s521 = sand.u32 %s174, 1
          %s522 = smul.addr %s521, 4
          %s523 = scalar_lea.vmem [#allocation8], %s522
          %524 = dma.done %s520, 64
        $region72: #{tpu_custom_call.1} parent=63 // pred_fallthru
          _
        // Predicated region
        $region73: #{tpu_custom_call.1} parent=63 // pred_check
          %p525 = pneg %p215
        $region74: #{tpu_custom_call.1} parent=63 // pred_check_branch
          %527 = sbr.rel (%p525) target = $region76
        $region75: #{tpu_custom_call.1} parent=63 // pred_region
          %s528 = sand.u32 %s30, 1
          %s529 = scalar_lea.sflag [#allocation9], %s528
          %s530 = sand.u32 %s200, 1
          %s531 = smul.addr %s530, 4
          %s532 = scalar_lea.vmem [#allocation10], %s531
          %533 = dma.done %s529, 64
        $region76: #{tpu_custom_call.1} parent=63 // pred_fallthru
          _
      $region64: #{tpu_custom_call.1} parent=5 // pred_fallthru
        _
    $region6: #{tpu_custom_call.1} parent=1 // loop_footer
      %s28 = sadd.s32 1, %s24
    $region7: #{tpu_custom_call.1} parent=1 // loop_footer_branch
      %23 = sbr.rel target = $region3
    $region8: #{tpu_custom_call.1} parent=1 // loop_exit
      _
    %534 = vsyncpa [#allocation3], 1
    %s535 = scalar_lea.sflag [#allocation3], 1
    %536 = vsyncpa %s535, 1
    %537 = vsyncpa [#allocation6], 1
    %538 = vsyncpa [#allocation4], 1
    %s539 = scalar_lea.sflag [#allocation4], 1
    %540 = vsyncpa %s539, 1
    %541 = vsyncpa [#allocation9], 1
    %s542 = scalar_lea.sflag [#allocation9], 1
    %543 = vsyncpa %s542, 1

</llo_original>
